<compile_context>
chip_gen: v7x
topology: tpu7x:2x2x1
jax: 0.10.0
libtpu: 0.0.40
codegen_flags: <defaults>
</compile_context>

<pallas_src>
import jax
import jax.numpy as jnp
from jax.experimental import pallas as pl
from jax.experimental.pallas import tpu as pltpu

EPS = 1e-6  # Annotated-Transformer LayerNorm eps (added to std, not var)


def _round_up(n, m):
    return ((n + m - 1) // m) * m


def _layer_norm_f32(x, gamma, beta):
    """One-pass LayerNorm: unbiased std (/(d-1)), eps added to std, f32 math."""
    d = x.shape[-1]
    s = jnp.sum(x, axis=-1, keepdims=True)
    sq = jnp.sum(x * x, axis=-1, keepdims=True)      # both XLU reductions back-to-back
    mean = s * (1.0 / d)
    var = jnp.maximum((sq - d * mean * mean) * (1.0 / (d - 1)), 0.0)
    inv = pl.reciprocal(jnp.sqrt(var) + EPS, approx=True)   # EUP slot, off the VALU
    return (x - mean) * inv * gamma + beta


def _fused_kernel(x_ref, gamma_ref, beta_ref, w_ref, bias_ref, o_ref):
    """Single-N-block path: full (D, D) bf16 weight resident in VMEM."""
    x = x_ref[...].astype(jnp.float32)
    normed = _layer_norm_f32(x, gamma_ref[...], beta_ref[...])
    y = jnp.dot(normed.astype(jnp.bfloat16), w_ref[...],
                preferred_element_type=jnp.float32) + bias_ref[...]
    # dropout (eval mode) == identity; residual add in f32.
    o_ref[...] = (x + y).astype(o_ref.dtype)


def _fused_kernel_ntiled(x_ref, gamma_ref, beta_ref, w_ref, bias_ref, o_ref,
                         normed_ref):
    """Large-D path: weight streamed in (D, tn) slabs; LN cached per row tile."""
    j = pl.program_id(1)
    tn = o_ref.shape[-1]

    @pl.when(j == 0)
    def _():
        x_full = x_ref[...].astype(jnp.float32)
        normed_ref[...] = _layer_norm_f32(
            x_full, gamma_ref[...], beta_ref[...]).astype(jnp.bfloat16)

    y = jnp.dot(normed_ref[...], w_ref[...],
                preferred_element_type=jnp.float32) + bias_ref[...]
    col = pl.multiple_of(j * tn, 128)        # tn is a multiple of 128 -> aligned slice
    x_blk = x_ref[:, pl.ds(col, tn)].astype(jnp.float32)
    o_ref[...] = (x_blk + y).astype(o_ref.dtype)


def _vmem_limit_bytes():
    cap = 64 * 1024 * 1024                   # conservative fallback (v7x per-TC VMEM)
    try:
        cap = int(getattr(pltpu.get_tpu_info(), "vmem_capacity_bytes", cap))
    except Exception:
        pass
    # ~3/4 of physical: ~96 MiB on v5e/v6e (128 MiB), ~48 MiB on v7x (64 MiB).
    return max(32 * 1024 * 1024, min((cap * 3) // 4, 112 * 1024 * 1024))


def _choose_tiles(rows, D, x_bytes, vmem_limit):
    budget = (vmem_limit * 4) // 5           # headroom for Mosaic internal scratch
    rows8 = _round_up(max(rows, 1), 8)
    # Path 1: keep the full bf16 (D, D) weight resident (Buffered(1)); tile rows only.
    for tr in (1024, 512, 256, 128, 64, 32, 16, 8):
        tr = min(tr, rows8)
        need = (4 * tr * D * x_bytes         # x + out tiles, double-buffered
                + 3 * tr * D * 4             # in-kernel f32 intermediates (rough)
                + D * D * 2)                 # resident bf16 weight (single buffer)
        if need <= budget:
            return tr, D
    # Path 2 (large D): stream (D, tn) weight slabs; LN cached in a VMEM scratch.
    tn = 512 if D % 512 == 0 else (256 if D % 256 == 0 else (128 if D % 128 == 0 else D))
    for tr in (512, 256, 128, 64, 32, 16, 8):
        tr = min(tr, rows8)
        need = (2 * tr * D * x_bytes + 2 * tr * tn * x_bytes
                + tr * D * 2 + 2 * tr * D * 4 + 2 * D * tn * 2)
        if need <= budget:
            return tr, tn
    return min(8, rows8), tn


def sublayer_connection(x, gamma, beta, w, bias, *, tile_rows=None, tile_cols=None):
    """x: [B, S, D]; gamma/beta/bias: [D]; w: [D, D] applied as normed @ w + bias.

    Pass `w` pre-cast to bf16 (cache it with the params) -- the in-call cast is
    only a fallback and costs an extra HBM pass at large D.  Output dtype
    matches x; pass bf16 x to halve HBM traffic (math stays f32 inside).
    For best store throughput keep D a multiple of 128 (lane-dense stores).
    """
    B, S, D = x.shape
    rows = B * S
    x2d = x.reshape(rows, D)

    if w.dtype != jnp.bfloat16:
        w = w.astype(jnp.bfloat16)           # fallback; prefer a cached bf16 copy

    gamma2d = gamma.reshape(1, D).astype(jnp.float32)
    beta2d = beta.reshape(1, D).astype(jnp.float32)
    bias2d = bias.reshape(1, D).astype(jnp.float32)

    vmem_limit = _vmem_limit_bytes()
    auto_tr, auto_tn = _choose_tiles(rows, D, jnp.dtype(x.dtype).itemsize, vmem_limit)

    tr = int(tile_rows) if tile_rows is not None else auto_tr
    if tr >= rows:
        tr = rows                            # single full-extent row block (always legal)
    else:
        tr = max(8, _round_up(tr, 8))        # blocked rows: sublane dim multiple of 8

    tn = int(tile_cols) if tile_cols is not None else auto_tn
    if tn >= D or D % tn != 0 or tn % 128 != 0:
        tn = D                               # no N tiling
    n_row = pl.cdiv(rows, tr)                # ragged tail handled by partial-block masking
    n_col = D // tn

    invariant = dict(pipeline_mode=pl.Buffered(1))   # grid-invariant -> single buffer

    if n_col == 1:
        kernel = _fused_kernel
        grid_spec = pltpu.PrefetchScalarGridSpec(
            num_scalar_prefetch=0,
            grid=(n_row,),
            in_specs=[
                pl.BlockSpec((tr, D), lambda i: (i, 0)),
                pl.BlockSpec((1, D), lambda i: (0, 0), **invariant),
                pl.BlockSpec((1, D), lambda i: (0, 0), **invariant),
                # Resident bf16 weight.  On v7x "parallel" rows mean each TC
                # holds its own copy -- Buffered(1) keeps that within 64 MiB/TC.
                pl.BlockSpec((D, D), lambda i: (0, 0), **invariant),
                pl.BlockSpec((1, D), lambda i: (0, 0), **invariant),
            ],
            out_specs=pl.BlockSpec((tr, D), lambda i: (i, 0)),
        )
        dims = ("parallel",)
    else:
        kernel = _fused_kernel_ntiled
        grid_spec = pltpu.PrefetchScalarGridSpec(
            num_scalar_prefetch=0,
            grid=(n_row, n_col),
            in_specs=[
                pl.BlockSpec((tr, D), lambda i, j: (i, 0)),
                pl.BlockSpec((1, D), lambda i, j: (0, 0), **invariant),
                pl.BlockSpec((1, D), lambda i, j: (0, 0), **invariant),
                pl.BlockSpec((D, tn), lambda i, j: (0, j)),   # streams with j: keep double-buffered
                pl.BlockSpec((1, tn), lambda i, j: (0, j)),
            ],
            out_specs=pl.BlockSpec((tr, tn), lambda i, j: (i, j)),
            scratch_shapes=[pltpu.VMEM((tr, D), jnp.bfloat16)],  # cached LayerNorm output
        )
        dims = ("parallel", "arbitrary")     # j runs in-order per row tile (scratch reuse)

    out2d = pl.pallas_call(
        kernel,
        out_shape=jax.ShapeDtypeStruct((rows, D), x.dtype),
        grid_spec=grid_spec,
        compiler_params=pltpu.CompilerParams(
            dimension_semantics=dims,
            vmem_limit_bytes=vmem_limit,
        ),
    )(x2d, gamma2d, beta2d, w, bias2d)

    return out2d.reshape(B, S, D)


def _reference(x, gamma, beta, w, bias):
    """Pure-JAX reference (module semantics; f32 LN, bf16 MXU operands)."""
    x32 = x.astype(jnp.float32)
    d = x.shape[-1]
    mean = jnp.mean(x32, axis=-1, keepdims=True)
    centered = x32 - mean
    std = jnp.sqrt(jnp.sum(centered * centered, axis=-1, keepdims=True) / (d - 1))
    normed = gamma * centered / (std + EPS) + beta
    y = jnp.dot(normed.astype(jnp.bfloat16), w.astype(jnp.bfloat16),
                preferred_element_type=jnp.float32) + bias
    return (x32 + y).astype(x.dtype)


if __name__ == "__main__":
    key = jax.random.PRNGKey(0)
    k1, k2, k3, k4, k5, k6, k7 = jax.random.split(key, 7)

    # --- check 1: small shape, resident-weight path (B=2, S=8, D=128) ---
    B, S, D = 2, 8, 128
    x = jax.random.normal(k1, (B, S, D), dtype=jnp.float32)
    gamma = jnp.ones((D,), jnp.float32)          # LayerNorm init: a_2 = 1
    beta = jnp.zeros((D,), jnp.float32)          #                 b_2 = 0
    w = jax.random.normal(k2, (D, D), jnp.float32) * (1.0 / jnp.sqrt(D))
    bias = jax.random.normal(k3, (D,), jnp.float32) * 0.01
    w_bf16 = w.astype(jnp.bfloat16)              # cast once, cached with the params

    out = jax.block_until_ready(sublayer_connection(x, gamma, beta, w_bf16, bias))
    ref = _reference(x, gamma, beta, w, bias)
    assert out.shape == x.shape
    assert jnp.allclose(out, ref, atol=2e-2, rtol=2e-2), "mismatch (resident-weight path)"

    # --- check 2: ragged rows + N-tiled weight path (forced small tiles) ---
    B2, S2, D2 = 3, 7, 256                       # rows = 21 -> ragged tail tile
    x2 = jax.random.normal(k4, (B2, S2, D2), dtype=jnp.float32)
    gamma2 = 1.0 + 0.1 * jax.random.normal(k5, (D2,), jnp.float32)
    beta2 = 0.02 * jax.random.normal(k6, (D2,), jnp.float32)
    w2 = jax.random.normal(k7, (D2, D2), jnp.float32) * (1.0 / jnp.sqrt(D2))
    bias2 = jnp.zeros((D2,), jnp.float32)

    out2 = jax.block_until_ready(
        sublayer_connection(x2, gamma2, beta2, w2.astype(jnp.bfloat16), bias2,
                            tile_rows=16, tile_cols=128))
    ref2 = _reference(x2, gamma2, beta2, w2, bias2)
    assert out2.shape == x2.shape
    assert jnp.allclose(out2, ref2, atol=2e-2, rtol=2e-2), "mismatch (N-tiled path)"

    print("KERNEL_OK")
</pallas_src>

<mosaic_0001>
module attributes {stable_mosaic.version = 11 : i64} {
  func.func @_fused_kernel(%arg0: i32, %arg1: memref<16x128xf32, #tpu.memory_space<vmem>>, %arg2: memref<1x128xf32, #tpu.memory_space<vmem>>, %arg3: memref<1x128xf32, #tpu.memory_space<vmem>>, %arg4: memref<128x128xbf16, #tpu.memory_space<vmem>>, %arg5: memref<1x128xf32, #tpu.memory_space<vmem>>, %arg6: memref<16x128xf32, #tpu.memory_space<vmem>>) attributes {dimension_semantics = [#tpu.dimension_semantics<parallel>], iteration_bounds = array<i64: 1>, scalar_prefetch = 0 : i64, scratch_operands = 0 : i64, tpu.core_type = #tpu.core_type<tc>, window_params = [{transform_indices = @transform_0, window_bounds = array<i64: 16, 128>}, {pipeline_mode = #tpu.pipeline_mode<synchronous>, transform_indices = @transform_1, window_bounds = array<i64: 1, 128>}, {pipeline_mode = #tpu.pipeline_mode<synchronous>, transform_indices = @transform_2, window_bounds = array<i64: 1, 128>}, {pipeline_mode = #tpu.pipeline_mode<synchronous>, transform_indices = @transform_3, window_bounds = array<i64: 128, 128>}, {pipeline_mode = #tpu.pipeline_mode<synchronous>, transform_indices = @transform_4, window_bounds = array<i64: 1, 128>}, {transform_indices = @transform_5, window_bounds = array<i64: 16, 128>}]} {
    %c0 = arith.constant 0 : index
    %c0_0 = arith.constant 0 : index
    %0 = vector.load %arg1[%c0, %c0_0] : memref<16x128xf32, #tpu.memory_space<vmem>>, vector<16x128xf32>
    %c0_1 = arith.constant 0 : index
    %c0_2 = arith.constant 0 : index
    %1 = vector.load %arg2[%c0_1, %c0_2] : memref<1x128xf32, #tpu.memory_space<vmem>>, vector<1x128xf32>
    %c0_3 = arith.constant 0 : index
    %c0_4 = arith.constant 0 : index
    %2 = vector.load %arg3[%c0_3, %c0_4] : memref<1x128xf32, #tpu.memory_space<vmem>>, vector<1x128xf32>
    %cst = arith.constant dense<0.000000e+00> : vector<16xf32>
    %3 = vector.multi_reduction <add>, %0, %cst [1] : vector<16x128xf32> to vector<16xf32>
    %4 = vector.shape_cast %3 : vector<16xf32> to vector<16x1xf32>
    %5 = arith.mulf %0, %0 : vector<16x128xf32>
    %cst_5 = arith.constant dense<0.000000e+00> : vector<16xf32>
    %6 = vector.multi_reduction <add>, %5, %cst_5 [1] : vector<16x128xf32> to vector<16xf32>
    %7 = vector.shape_cast %6 : vector<16xf32> to vector<16x1xf32>
    %cst_6 = arith.constant 7.812500e-03 : f32
    %8 = vector.broadcast %cst_6 : f32 to vector<16x1xf32>
    %9 = arith.mulf %4, %8 : vector<16x1xf32>
    %cst_7 = arith.constant 1.280000e+02 : f32
    %10 = vector.broadcast %cst_7 : f32 to vector<16x1xf32>
    %11 = arith.mulf %10, %9 : vector<16x1xf32>
    %12 = arith.mulf %11, %9 : vector<16x1xf32>
    %13 = arith.subf %7, %12 : vector<16x1xf32>
    %cst_8 = arith.constant 0.00787401571 : f32
    %14 = vector.broadcast %cst_8 : f32 to vector<16x1xf32>
    %15 = arith.mulf %13, %14 : vector<16x1xf32>
    %cst_9 = arith.constant 0.000000e+00 : f32
    %16 = vector.broadcast %cst_9 : f32 to vector<16x1xf32>
    %17 = arith.maximumf %15, %16 : vector<16x1xf32>
    %18 = math.sqrt %17 : vector<16x1xf32>
    %cst_10 = arith.constant 9.99999997E-7 : f32
    %19 = vector.broadcast %cst_10 : f32 to vector<16x1xf32>
    %20 = arith.addf %18, %19 : vector<16x1xf32>
    %21 = tpu.reciprocal %20 {approx = true} : vector<16x1xf32> -> vector<16x1xf32>
    %22 = vector.broadcast %9 : vector<16x1xf32> to vector<16x128xf32>
    %23 = arith.subf %0, %22 : vector<16x128xf32>
    %24 = vector.broadcast %21 : vector<16x1xf32> to vector<16x128xf32>
    %25 = arith.mulf %23, %24 : vector<16x128xf32>
    %26 = vector.broadcast %1 : vector<1x128xf32> to vector<16x128xf32>
    %27 = arith.mulf %25, %26 : vector<16x128xf32>
    %28 = vector.broadcast %2 : vector<1x128xf32> to vector<16x128xf32>
    %29 = arith.addf %27, %28 : vector<16x128xf32>
    %30 = arith.truncf %29 : vector<16x128xf32> to vector<16x128xbf16>
    %c0_11 = arith.constant 0 : index
    %c0_12 = arith.constant 0 : index
    %31 = vector.load %arg4[%c0_11, %c0_12] : memref<128x128xbf16, #tpu.memory_space<vmem>>, vector<128x128xbf16>
    %cst_13 = arith.constant dense<0.000000e+00> : vector<16x128xf32>
    %32 = tpu.matmul %30, %31, %cst_13 {dimension_numbers = #tpu.dot_dimension_numbers<[1], [0], [0], [1], [0, 0, 1, 1], [], []>} : vector<16x128xbf16>, vector<128x128xbf16>, vector<16x128xf32> -> vector<16x128xf32>
    %c0_14 = arith.constant 0 : index
    %c0_15 = arith.constant 0 : index
    %33 = vector.load %arg5[%c0_14, %c0_15] : memref<1x128xf32, #tpu.memory_space<vmem>>, vector<1x128xf32>
    %34 = vector.broadcast %33 : vector<1x128xf32> to vector<16x128xf32>
    %35 = arith.addf %32, %34 : vector<16x128xf32>
    %36 = arith.addf %0, %35 : vector<16x128xf32>
    %c0_16 = arith.constant 0 : index
    %c0_17 = arith.constant 0 : index
    %37 = vector.load %arg6[%c0_16, %c0_17] : memref<16x128xf32, #tpu.memory_space<vmem>>, vector<16x128xf32>
    tpu.vector_store %arg6[%c0_16, %c0_17], %36 {strides = array<i32>} : memref<16x128xf32, #tpu.memory_space<vmem>>, vector<16x128xf32>,
    return
  }
  func.func @transform_0(%arg0: i32) -> (i32, i32) {
    %c0_i32 = arith.constant 0 : i32
    %c0_i32_0 = arith.constant 0 : i32
    return %arg0, %c0_i32 : i32, i32
  }
  func.func @transform_1(%arg0: i32) -> (i32, i32) {
    %c0_i32 = arith.constant 0 : i32
    %c0_i32_0 = arith.constant 0 : i32
    %c0_i32_1 = arith.constant 0 : i32
    return %c0_i32, %c0_i32_0 : i32, i32
  }
  func.func @transform_2(%arg0: i32) -> (i32, i32) {
    %c0_i32 = arith.constant 0 : i32
    %c0_i32_0 = arith.constant 0 : i32
    %c0_i32_1 = arith.constant 0 : i32
    return %c0_i32, %c0_i32_0 : i32, i32
  }
  func.func @transform_3(%arg0: i32) -> (i32, i32) {
    %c0_i32 = arith.constant 0 : i32
    %c0_i32_0 = arith.constant 0 : i32
    %c0_i32_1 = arith.constant 0 : i32
    return %c0_i32, %c0_i32_0 : i32, i32
  }
  func.func @transform_4(%arg0: i32) -> (i32, i32) {
    %c0_i32 = arith.constant 0 : i32
    %c0_i32_0 = arith.constant 0 : i32
    %c0_i32_1 = arith.constant 0 : i32
    return %c0_i32, %c0_i32_0 : i32, i32
  }
  func.func @transform_5(%arg0: i32) -> (i32, i32) {
    %c0_i32 = arith.constant 0 : i32
    %c0_i32_0 = arith.constant 0 : i32
    return %arg0, %c0_i32 : i32, i32
  }
}

</mosaic_0001>

<llo_original>
// kernel: tpu_custom_call.1
$region0: #{tpu_custom_call.1}
  #allocation0 [shape = 'u32[]', space=smem, size = 0x4, offset = 0x4, fixed_abs, tag = 'smem constant byte address 0x4 - core index']
  #allocation1 [shape = 'u32[144,128]{1,0:T(1,128)}', space=vmem, size = 0x12000, scoped, tag = 'internal scratch']
  %s0 = inlined_call_operand.hbm [shape: f32[16,128], index: 0, kind: input, shape index: {}]
  %s1 = inlined_call_operand.vmem [shape: f32[1,128], index: 1, kind: input, shape index: {}]
  %s2 = inlined_call_operand.vmem [shape: f32[1,128], index: 2, kind: input, shape index: {}]
  %s3 = inlined_call_operand.hbm [shape: bf16[128,128], index: 3, kind: input, shape index: {}]
  %s4 = inlined_call_operand.vmem [shape: f32[1,128], index: 4, kind: input, shape index: {}]
  %s5 = inlined_call_operand.hbm [shape: f32[16,128], index: 5, kind: output, shape index: {}]
  %s6 = sld [smem:[#allocation0]]
  $region38: #{tpu_custom_call.1} parent=0
    _
  %s8 = ssub.s32 1, %s6
  %s9 = scalar_select 0, %s8, %s6
  $region1: #{tpu_custom_call.1} parent=0
    #allocation2 [shape = 'u8[8192]{0}', space=vmem, size = 0x2000, scoped, tag = 'input window, operand 0, single buffered']
    #allocation3 [shape = 's32[1]{0}', space=sflag, size = 0x4, scoped, tag = 'scoped memory for tpu_custom_call.1']
    #allocation4 [shape = 's32[1]{0}', space=sflag, size = 0x4, scoped, tag = 'scoped memory for tpu_custom_call.1']
    #allocation5 [shape = 'u8[32768]{0}', space=vmem, size = 0x8000, scoped, tag = 'input window, operand 3, single buffered']
    #allocation6 [shape = 's32[1]{0}', space=sflag, size = 0x4, scoped, tag = 'scoped memory for tpu_custom_call.1']
    #allocation7 [shape = 'u8[8192]{0}', space=vmem, size = 0x2000, scoped, tag = 'output window, operand 0, single buffered']
    %10 = vsyncpa [#allocation3], 0
    %11 = vsyncpa [#allocation6], 0
    %12 = vsyncpa [#allocation4], 0
    // Predicated region
    $region2: #{tpu_custom_call.1} parent=1 // pred_check
      _
    $region3: #{tpu_custom_call.1} parent=1 // pred_check_branch
      %14 = sbr.rel (0) target = $region5
    $region4: #{tpu_custom_call.1} parent=1 // pred_region
      %s16 = ssub.s32 256, 256
      %17 = vsyncadd [#allocation3], %s16
      %s18 = sshll.u32 [#allocation2], 4
      %s19 = int_to_ptr.vmem [resolvable:$true] %s18
      %24 = dma.hbm_to_vmem [thread:$0]  %s0, 256, %s19, [#allocation3], 128, 128, 8
    $region5: #{tpu_custom_call.1} parent=1 // pred_fallthru
      _
    // Predicated region
    $region6: #{tpu_custom_call.1} parent=1 // pred_check
      _
    $region7: #{tpu_custom_call.1} parent=1 // pred_check_branch
      %26 = sbr.rel (0) target = $region9
    $region8: #{tpu_custom_call.1} parent=1 // pred_region
      _
    $region9: #{tpu_custom_call.1} parent=1 // pred_fallthru
      _
    // Predicated region
    $region10: #{tpu_custom_call.1} parent=1 // pred_check
      _
    $region11: #{tpu_custom_call.1} parent=1 // pred_check_branch
      %28 = sbr.rel (0) target = $region13
    $region12: #{tpu_custom_call.1} parent=1 // pred_region
      _
    $region13: #{tpu_custom_call.1} parent=1 // pred_fallthru
      _
    // Predicated region
    $region14: #{tpu_custom_call.1} parent=1 // pred_check
      _
    $region15: #{tpu_custom_call.1} parent=1 // pred_check_branch
      %30 = sbr.rel (0) target = $region17
    $region16: #{tpu_custom_call.1} parent=1 // pred_region
      %s32 = ssub.s32 1024, 1024
      %33 = vsyncadd [#allocation6], %s32
      %s34 = sshll.u32 [#allocation5], 4
      %s35 = int_to_ptr.vmem [resolvable:$true] %s34
      %40 = dma.hbm_to_vmem [thread:$0]  %s3, 1024, %s35, [#allocation6], 64, 64, 4
    $region17: #{tpu_custom_call.1} parent=1 // pred_fallthru
      _
    // Predicated region
    $region18: #{tpu_custom_call.1} parent=1 // pred_check
      _
    $region19: #{tpu_custom_call.1} parent=1 // pred_check_branch
      %42 = sbr.rel (0) target = $region21
    $region20: #{tpu_custom_call.1} parent=1 // pred_region
      _
    $region21: #{tpu_custom_call.1} parent=1 // pred_fallthru
      _
    // Predicated region
    $region22: #{tpu_custom_call.1} parent=1 // pred_check
      _
    $region23: #{tpu_custom_call.1} parent=1 // pred_check_branch
      %44 = sbr.rel (0) target = $region25
    $region24: #{tpu_custom_call.1} parent=1 // pred_region
      %45 = dma.done [#allocation3], 256
    $region25: #{tpu_custom_call.1} parent=1 // pred_fallthru
      _
    // Predicated region
    $region26: #{tpu_custom_call.1} parent=1 // pred_check
      _
    $region27: #{tpu_custom_call.1} parent=1 // pred_check_branch
      %47 = sbr.rel (0) target = $region29
    $region28: #{tpu_custom_call.1} parent=1 // pred_region
      %48 = dma.done [#allocation6], 1024
    $region29: #{tpu_custom_call.1} parent=1 // pred_fallthru
      _
    %v50 = vld [vmem:[#allocation2] sm:$0xff]
    %v51 = vld [vmem:[#allocation2 + $0x8] sm:$0xff]
    %v52 = vld [vmem:[%s1] sm:$0x1]
    %v53 = vld [vmem:[%s2] sm:$0x1]
    %54 = vadd.xlane.f32.xlu0 %v50
    %v55 = vpop.xlane.xlu0 %54
    %56 = vadd.xlane.f32.xlu0 %v51
    %v57 = vpop.xlane.xlu0 %56
    %v58 = vmul.f32 %v50, %v50
    %v59 = vmul.f32 %v51, %v51
    %60 = vadd.xlane.f32.xlu0 %v58
    %v61 = vpop.xlane.xlu0 %60
    %62 = vadd.xlane.f32.xlu0 %v59
    %v63 = vpop.xlane.xlu0 %62
    %v64 = vmul.f32 %v55, 0.0078125
    %v65 = vmul.f32 %v57, 0.0078125
    %v66 = vmul.f32 %v64, 128.0
    %v67 = vmul.f32 %v65, 128.0
    %v68 = vmul.f32 %v66, %v64
    %v69 = vmul.f32 %v67, %v65
    %v70 = vsub.f32 %v61, %v68
    %v71 = vsub.f32 %v63, %v69
    %v72 = vmul.f32 %v70, 0.007874016
    %v73 = vmul.f32 %v71, 0.007874016
    %v74 = vmax.f32 %v72, 0.0
    %v75 = vmax.f32 %v73, 0.0
    %v76 = vrsqrt.pop %v74
    %v77 = vmul.f32 %v74, %v76
    %vm78 = vcmp.eq.f32.partialorder %v74, inf
    %v79 = vsel %vm78, %v74, %v77
    %vm80 = vcmp.eq.f32.partialorder %v74, 0.0
    %v81 = vand.u32 %v74, 2147483648
    %v82 = vsel %vm80, %v81, %v79
    %v83 = vrsqrt.pop %v75
    %v84 = vmul.f32 %v75, %v83
    %vm85 = vcmp.eq.f32.partialorder %v75, inf
    %v86 = vsel %vm85, %v75, %v84
    %vm87 = vcmp.eq.f32.partialorder %v75, 0.0
    %v88 = vand.u32 %v75, 2147483648
    %v89 = vsel %vm87, %v88, %v86
    %v90 = vadd.f32 %v82, 1e-06
    %v91 = vadd.f32 %v89, 1e-06
    %v92 = vrcp.pop %v90
    %v93 = vrcp.pop %v91
    %v94 = vsub.f32 %v50, %v64
    %v95 = vsub.f32 %v51, %v65
    %v96 = vmul.f32 %v94, %v92
    %v97 = vmul.f32 %v95, %v93
    %v99 = vlaneseq
    %v100 = vshrl.u32 %v99, 7
    %v101 = vsub.s32 0, %v100
    %v102 = vrot.slane %v52, %v101
    %v104 = vmul.f32 %v96, %v102
    %v105 = vmul.f32 %v97, %v102
    %v107 = vlaneseq
    %v108 = vshrl.u32 %v107, 7
    %v109 = vsub.s32 0, %v108
    %v110 = vrot.slane %v53, %v109
    %v112 = vadd.f32 %v104, %v110
    %v113 = vadd.f32 %v105, %v110
    %v114 = vpack.c.bf16 %v113, %v112
    %v115 = vld [vmem:[#allocation5] sm:$0xf]
    %v116 = vld [vmem:[#allocation5 + $0x4] sm:$0xf]
    %v117 = vld [vmem:[#allocation5 + $0x8] sm:$0xf]
    %v118 = vld [vmem:[#allocation5 + $0xc] sm:$0xf]
    %v119 = vld [vmem:[#allocation5 + $0x10] sm:$0xf]
    %v120 = vld [vmem:[#allocation5 + $0x14] sm:$0xf]
    %v121 = vld [vmem:[#allocation5 + $0x18] sm:$0xf]
    %v122 = vld [vmem:[#allocation5 + $0x1c] sm:$0xf]
    %v123 = vld [vmem:[#allocation5 + $0x20] sm:$0xf]
    %v124 = vld [vmem:[#allocation5 + $0x24] sm:$0xf]
    %v125 = vld [vmem:[#allocation5 + $0x28] sm:$0xf]
    %v126 = vld [vmem:[#allocation5 + $0x2c] sm:$0xf]
    %v127 = vld [vmem:[#allocation5 + $0x30] sm:$0xf]
    %v128 = vld [vmem:[#allocation5 + $0x34] sm:$0xf]
    %v129 = vld [vmem:[#allocation5 + $0x38] sm:$0xf]
    %v130 = vld [vmem:[#allocation5 + $0x3c] sm:$0xf]
    %v131 = vld [vmem:[%s4] sm:$0x1]
    %v133 = vlaneseq
    %v134 = vshrl.u32 %v133, 7
    %v135 = vsub.s32 0, %v134
    %v136 = vrot.slane %v131, %v135
    %v154 = vunpack.c.l.b16 %v115
    %v155 = vunpack.c.l.b16 %v116
    %v156 = vunpack.c.l.b16 %v117
    %v157 = vunpack.c.l.b16 %v118
    %v158 = vunpack.c.l.b16 %v119
    %v159 = vunpack.c.l.b16 %v120
    %v160 = vunpack.c.l.b16 %v121
    %v161 = vunpack.c.l.b16 %v122
    %v162 = vunpack.c.l.b16 %v123
    %v163 = vunpack.c.l.b16 %v124
    %v164 = vunpack.c.l.b16 %v125
    %v165 = vunpack.c.l.b16 %v126
    %v166 = vunpack.c.l.b16 %v127
    %v167 = vunpack.c.l.b16 %v128
    %v168 = vunpack.c.l.b16 %v129
    %v169 = vunpack.c.l.b16 %v130
    %v170 = vpack.c.b16 %v155, %v154
    %v171 = vpack.c.b16 %v157, %v156
    %v172 = vpack.c.b16 %v159, %v158
    %v173 = vpack.c.b16 %v161, %v160
    %v174 = vpack.c.b16 %v163, %v162
    %v175 = vpack.c.b16 %v165, %v164
    %v176 = vpack.c.b16 %v167, %v166
    %v177 = vpack.c.b16 %v169, %v168
    %186 = vmatprep.subr.bf16.mxu0 0
    %187 = vmatpush1.bf16.msra.mxu0 %v170
    %188 = vmatprep.subr.bf16.mxu0 0
    %189 = vmatpush1.bf16.msra.mxu0 %v171
    %190 = vmatprep.subr.bf16.mxu0 0
    %191 = vmatpush1.bf16.msra.mxu0 %v172
    %192 = vmatprep.subr.bf16.mxu0 0
    %193 = vmatpush1.bf16.msra.mxu0 %v173
    %194 = vmatprep.subr.bf16.mxu0 0
    %195 = vmatpush1.bf16.msra.mxu0 %v174
    %196 = vmatprep.subr.bf16.mxu0 0
    %197 = vmatpush1.bf16.msra.mxu0 %v175
    %198 = vmatprep.subr.bf16.mxu0 0
    %199 = vmatpush1.bf16.msra.mxu0 %v176
    %200 = vmatprep.subr.bf16.mxu0 0
    %201 = vmatpush1.bf16.msra.mxu0 %v177
    %202 = vmatprep.subr.bf16.mxu0 0
    %203 = vmatpush1.bf16.msra.mxu0 0
    %204 = vmatprep.subr.bf16.mxu0 0
    %205 = vmatpush1.bf16.msra.mxu0 0
    %206 = vmatprep.subr.bf16.mxu0 0
    %207 = vmatpush1.bf16.msra.mxu0 0
    %208 = vmatprep.subr.bf16.mxu0 0
    %209 = vmatpush1.bf16.msra.mxu0 0
    %210 = vmatprep.subr.bf16.mxu0 0
    %211 = vmatpush1.bf16.msra.mxu0 0
    %212 = vmatprep.subr.bf16.mxu0 0
    %213 = vmatpush1.bf16.msra.mxu0 0
    %214 = vmatprep.subr.bf16.mxu0 0
    %215 = vmatpush1.bf16.msra.mxu0 0
    %216 = vmatprep.subr.bf16.mxu0 0
    %217 = vmatpush1.bf16.msra.mxu0 0
    %218 = vmatprep.mubr.bf16.mxu0 0
    %219 = vmatmul.mubr.bf16.gmra.mrb[0].mxu0 %v114
    %v220 = vpop.f32.mrb[0].mxu0
    %v221 = vadd.f32 %v136, %v220
    %v222 = vpop.f32.mrb[0].mxu0
    %v223 = vpop.f32.mrb[0].mxu0
    %v224 = vadd.f32 %v136, %v223
    %v225 = vpop.f32.mrb[0].mxu0
    %226 = vdwg.mxu0
    %v227 = vadd.f32 %v50, %v221
    %v228 = vadd.f32 %v51, %v224
    %229 = vst [vmem:[#allocation7] sm:$0xff] %v227
    %230 = vst [vmem:[#allocation7 + $0x8] sm:$0xff] %v228
    // Predicated region
    $region30: #{tpu_custom_call.1} parent=1 // pred_check
      _
    $region31: #{tpu_custom_call.1} parent=1 // pred_check_branch
      %232 = sbr.rel (0) target = $region33
    $region32: #{tpu_custom_call.1} parent=1 // pred_region
      %s234 = ssub.s32 256, 256
      %235 = vsyncadd [#allocation4], %s234
      %s236 = sshll.u32 [#allocation7], 4
      %s237 = int_to_ptr.vmem [resolvable:$true] %s236
      %242 = dma.vmem_to_hbm [thread:$0]  %s237, 256, %s5, [#allocation4], 128, 128, 8
    $region33: #{tpu_custom_call.1} parent=1 // pred_fallthru
      _
    // Predicated region
    $region34: #{tpu_custom_call.1} parent=1 // pred_check
      _
    $region35: #{tpu_custom_call.1} parent=1 // pred_check_branch
      %244 = sbr.rel (0) target = $region37
    $region36: #{tpu_custom_call.1} parent=1 // pred_region
      %245 = dma.done [#allocation4], 256
    $region37: #{tpu_custom_call.1} parent=1 // pred_fallthru
      _
    %246 = vsyncpa [#allocation3], 1
    %247 = vsyncpa [#allocation6], 1
    %248 = vsyncpa [#allocation4], 1

</llo_original>
